<compile_context>
chip_gen: v6e
topology: v6e:2x2x1
jax: 0.10.0
libtpu: 0.0.40
codegen_flags: <defaults>
</compile_context>

<pallas_src>
import jax
import jax.numpy as jnp
import numpy as np
from jax import lax
from jax.experimental import pallas as pl
from jax.experimental.pallas import tpu as pltpu


def self_attn_kernel(gamma_ref, x_ref, wf_ref, bf_ref, out_ref, attn_ref, proj_ref):
    # x_ref    : (1, C, N)   f32   -- one batch element, channels x pixels
    # wf_ref   : (Ctot, C)   bf16  -- fused [Wq_pad | Wk_pad | Wv] (row-padded to 8)
    # bf_ref   : (Ctot, 1)   f32   -- fused bias (padded rows are zero)
    # out_ref  : (1, C, TQ)  f32   -- output tile (query-pixel columns of this step)
    # attn_ref : (1, TQ, N)  f32   -- attention row-tile
    # proj_ref : (Ctot, N)   bf16  -- scratch: fused q/k/v projection, per batch elem
    _, C, N = x_ref.shape
    ctot = proj_ref.shape[0]
    cq_pad = (ctot - C) // 2
    tq = out_ref.shape[2]
    qi = pl.program_id(1)

    # Fused q/k/v projection (one MXU pass), computed once per batch element and
    # reused by every query tile of that batch element.
    @pl.when(qi == 0)
    def _():
        xb = x_ref[0].astype(jnp.bfloat16)                                   # (C, N)
        proj = jnp.dot(wf_ref[...], xb, preferred_element_type=jnp.float32)  # (Ctot, N)
        proj_ref[...] = (proj + bf_ref[...]).astype(jnp.bfloat16)

    col0 = pl.multiple_of(qi * tq, tq)
    q_t = proj_ref[pl.ds(0, cq_pad), pl.ds(col0, tq)]        # (Cq_pad, TQ) bf16
    k_t = proj_ref[pl.ds(cq_pad, cq_pad), :]                 # (Cq_pad, N)  bf16
    v_t = proj_ref[pl.ds(2 * cq_pad, C), :]                  # (C, N)       bf16

    # energy[i, j] = <q_i, k_j>  (zero-padded rows contribute nothing)
    energy = lax.dot_general(
        q_t, k_t, (((0,), (0,)), ((), ())),
        preferred_element_type=jnp.float32)                  # (TQ, N) f32

    # Row softmax in f32 (matches torch.nn.Softmax(dim=-1)); divide -> EUP recip.
    m = jnp.max(energy, axis=-1, keepdims=True)
    e = jnp.exp(energy - m)
    l = jnp.sum(e, axis=-1, keepdims=True)
    attn = e * pl.reciprocal(l, approx=True)                 # (TQ, N) f32

    # out[c, i] = sum_j v[c, j] * attn[i, j]   (== torch.bmm(value, attention^T))
    o = lax.dot_general(
        v_t, attn.astype(jnp.bfloat16), (((1,), (1,)), ((), ())),
        preferred_element_type=jnp.float32)                  # (C, TQ) f32

    gamma = gamma_ref[0, 0]
    out_ref[0] = gamma * o + x_ref[0, :, pl.ds(col0, tq)]
    attn_ref[0] = attn


def self_attn(x_nchw, params, tq=None):
    """x_nchw: (B, C, W, H) float32. Returns (out (B,C,W,H) f32, attention (B,N,N) f32)."""
    B, C, W, H = x_nchw.shape
    N = W * H
    assert C >= 8, "in_channels must be >= 8 (Cq = C // 8)"

    wq, bq = params["wq"], params["bq"]      # (Cq, C), (Cq,)
    wk, bk = params["wk"], params["bk"]      # (Cq, C), (Cq,)
    wv, bv = params["wv"], params["bv"]      # (C,  C), (C,)
    Cq = wq.shape[0]
    cq_pad = max(8, ((Cq + 7) // 8) * 8)     # round Cq up to a sublane multiple
    ctot = 2 * cq_pad + C

    def pad_rows(w, b, rows):
        wp = jnp.zeros((rows, C), jnp.float32).at[: w.shape[0]].set(w)
        bp = jnp.zeros((rows,), jnp.float32).at[: b.shape[0]].set(b)
        return wp, bp

    wq_p, bq_p = pad_rows(wq, bq, cq_pad)
    wk_p, bk_p = pad_rows(wk, bk, cq_pad)
    w_fused = jnp.concatenate([wq_p, wk_p, wv.astype(jnp.float32)], axis=0)
    w_fused = w_fused.astype(jnp.bfloat16)                              # (Ctot, C)
    b_fused = jnp.concatenate([bq_p, bk_p, bv.astype(jnp.float32)], axis=0)
    b_fused = b_fused.reshape(ctot, 1).astype(jnp.float32)              # (Ctot, 1)

    # NCHW -> (B, C, N): pure reshape, no transpose / extra HBM pass.
    x_flat = x_nchw.reshape(B, C, N).astype(jnp.float32)
    gamma = params["gamma"].reshape(1, 1).astype(jnp.float32)

    if tq is None:
        tq = 128 if N % 128 == 0 else N
    assert N % tq == 0, "query tile must divide N"
    n_qt = N // tq

    out_flat, attn = pl.pallas_call(
        self_attn_kernel,
        grid=(B, n_qt),
        in_specs=[
            pl.BlockSpec((1, 1), lambda b, qi: (0, 0), memory_space=pltpu.SMEM),  # gamma
            pl.BlockSpec((1, C, N), lambda b, qi: (b, 0, 0)),                     # x (resident per batch)
            pl.BlockSpec((ctot, C), lambda b, qi: (0, 0)),                        # fused weight
            pl.BlockSpec((ctot, 1), lambda b, qi: (0, 0)),                        # fused bias
        ],
        out_specs=(
            pl.BlockSpec((1, C, tq), lambda b, qi: (b, 0, qi)),                   # out tile
            pl.BlockSpec((1, tq, N), lambda b, qi: (b, qi, 0)),                   # attn row tile
        ),
        out_shape=(
            jax.ShapeDtypeStruct((B, C, N), jnp.float32),
            jax.ShapeDtypeStruct((B, N, N), jnp.float32),
        ),
        scratch_shapes=[pltpu.VMEM((ctot, N), jnp.bfloat16)],                     # fused q/k/v projection
        compiler_params=pltpu.CompilerParams(
            dimension_semantics=("parallel", "arbitrary"),
            vmem_limit_bytes=48 * 1024 * 1024,
        ),
    )(gamma, x_flat, w_fused, b_fused)

    out = out_flat.reshape(B, C, W, H)
    return out, attn


def init_params(key, C):
    """Deterministic synthetic parameters in PyTorch conv layout (Cout, Cin)."""
    Cq = C // 8
    k1, k2, k3, k4, k5, k6 = jax.random.split(key, 6)
    s = 0.1
    return {
        "wq": s * jax.random.normal(k1, (Cq, C), jnp.float32),
        "bq": s * jax.random.normal(k2, (Cq,), jnp.float32),
        "wk": s * jax.random.normal(k3, (Cq, C), jnp.float32),
        "bk": s * jax.random.normal(k4, (Cq,), jnp.float32),
        "wv": s * jax.random.normal(k5, (C, C), jnp.float32),
        "bv": s * jax.random.normal(k6, (C,), jnp.float32),
        # PyTorch initializes gamma = 0 (pure residual); use a nonzero value here
        # so the attention path actually contributes in the test.
        "gamma": jnp.full((1,), 0.5, jnp.float32),
    }


def ref_self_attn(x, p):
    """Pure-JAX f32 reference mirroring the PyTorch forward."""
    B, C, W, H = x.shape
    N = W * H
    xf = x.reshape(B, C, N)
    q = jnp.einsum("oc,bcn->bon", p["wq"], xf) + p["bq"][None, :, None]   # (B, Cq, N)
    k = jnp.einsum("oc,bcn->bon", p["wk"], xf) + p["bk"][None, :, None]   # (B, Cq, N)
    v = jnp.einsum("oc,bcn->bon", p["wv"], xf) + p["bv"][None, :, None]   # (B, C,  N)
    energy = jnp.einsum("bci,bcj->bij", q, k)                             # (B, N, N)
    attn = jax.nn.softmax(energy, axis=-1)
    o = jnp.einsum("bcj,bij->bci", v, attn)                               # (B, C, N)
    out = p["gamma"][0] * o.reshape(B, C, W, H) + x
    return out, attn


if __name__ == "__main__":
    B, C, W, H = 2, 16, 16, 16          # N = 256, Cq = 2
    key = jax.random.PRNGKey(0)
    kx, kp = jax.random.split(key)
    x = jax.random.normal(kx, (B, C, W, H), jnp.float32)
    params = init_params(kp, C)

    out, attn = self_attn(x, params, tq=128)   # 2 query tiles per batch element
    out = jax.block_until_ready(out)
    attn = jax.block_until_ready(attn)

    ref_out, ref_attn = ref_self_attn(x, params)
    # bf16 matmul operands + approx reciprocal => loosened tolerances vs f32 reference
    np.testing.assert_allclose(np.asarray(out), np.asarray(ref_out), rtol=2e-2, atol=2e-2)
    np.testing.assert_allclose(np.asarray(attn), np.asarray(ref_attn), rtol=2e-2, atol=2e-3)

    print("KERNEL_OK")
</pallas_src>

<mosaic_0001>
module attributes {stable_mosaic.version = 11 : i64} {
  func.func @self_attn_kernel(%arg0: i32, %arg1: i32, %arg2: memref<1x1xf32, #tpu.memory_space<smem>>, %arg3: memref<1x16x256xf32, #tpu.memory_space<vmem>>, %arg4: memref<32x16xbf16, #tpu.memory_space<vmem>>, %arg5: memref<32x1xf32, #tpu.memory_space<vmem>>, %arg6: memref<1x16x128xf32, #tpu.memory_space<vmem>>, %arg7: memref<1x128x256xf32, #tpu.memory_space<vmem>>, %arg8: memref<32x256xbf16, #tpu.memory_space<vmem>>) attributes {dimension_semantics = [#tpu.dimension_semantics<parallel>, #tpu.dimension_semantics<arbitrary>], iteration_bounds = array<i64: 2, 2>, scalar_prefetch = 0 : i64, scratch_operands = 1 : i64, tpu.core_type = #tpu.core_type<tc>, window_params = [{transform_indices = @transform_0, window_bounds = array<i64: 1, 1>}, {transform_indices = @transform_1, window_bounds = array<i64: 1, 16, 256>}, {pipeline_mode = #tpu.pipeline_mode<synchronous>, transform_indices = @transform_2, window_bounds = array<i64: 32, 16>}, {pipeline_mode = #tpu.pipeline_mode<synchronous>, transform_indices = @transform_3, window_bounds = array<i64: 32, 1>}, {transform_indices = @transform_4, window_bounds = array<i64: 1, 16, 128>}, {transform_indices = @transform_5, window_bounds = array<i64: 1, 128, 256>}]} {
    %c0_i32 = arith.constant 0 : i32
    %0 = arith.cmpi eq, %arg1, %c0_i32 : i32
    %1 = arith.extui %0 : i1 to i32
    %c0_i32_0 = arith.constant 0 : i32
    %2 = arith.cmpi ne, %1, %c0_i32_0 : i32
    scf.if %2 {
      %c0_16 = arith.constant 0 : index
      %c0_17 = arith.constant 0 : index
      %c0_18 = arith.constant 0 : index
      %35 = vector.load %arg3[%c0_16, %c0_17, %c0_18] : memref<1x16x256xf32, #tpu.memory_space<vmem>>, vector<1x16x256xf32>
      %36 = vector.shape_cast %35 : vector<1x16x256xf32> to vector<16x256xf32>
      %37 = arith.truncf %36 : vector<16x256xf32> to vector<16x256xbf16>
      %c0_19 = arith.constant 0 : index
      %c0_20 = arith.constant 0 : index
      %38 = vector.load %arg4[%c0_19, %c0_20] : memref<32x16xbf16, #tpu.memory_space<vmem>>, vector<32x16xbf16>
      %cst_21 = arith.constant dense<0.000000e+00> : vector<32x256xf32>
      %39 = tpu.matmul %38, %37, %cst_21 {dimension_numbers = #tpu.dot_dimension_numbers<[1], [0], [0], [1], [0, 0, 1, 1], [], []>} : vector<32x16xbf16>, vector<16x256xbf16>, vector<32x256xf32> -> vector<32x256xf32>
      %c0_22 = arith.constant 0 : index
      %c0_23 = arith.constant 0 : index
      %40 = vector.load %arg5[%c0_22, %c0_23] : memref<32x1xf32, #tpu.memory_space<vmem>>, vector<32x1xf32>
      %41 = vector.broadcast %40 : vector<32x1xf32> to vector<32x256xf32>
      %42 = arith.addf %39, %41 : vector<32x256xf32>
      %43 = arith.truncf %42 : vector<32x256xf32> to vector<32x256xbf16>
      %c0_24 = arith.constant 0 : index
      %c0_25 = arith.constant 0 : index
      %44 = vector.load %arg8[%c0_24, %c0_25] : memref<32x256xbf16, #tpu.memory_space<vmem>>, vector<32x256xbf16>
      tpu.vector_store %arg8[%c0_24, %c0_25], %43 {strides = array<i32>} : memref<32x256xbf16, #tpu.memory_space<vmem>>, vector<32x256xbf16>,
    } else {
    }
    %c128_i32 = arith.constant 128 : i32
    %3 = arith.muli %arg1, %c128_i32 : i32
    %4 = tpu.assume_multiple %3, 128 : i32
    %c0 = arith.constant 0 : index
    %5 = arith.index_cast %4 : i32 to index
    %6 = vector.load %arg8[%c0, %5] : memref<32x256xbf16, #tpu.memory_space<vmem>>, vector<8x128xbf16>
    %c8 = arith.constant 8 : index
    %c0_1 = arith.constant 0 : index
    %7 = vector.load %arg8[%c8, %c0_1] : memref<32x256xbf16, #tpu.memory_space<vmem>>, vector<8x256xbf16>
    %c16 = arith.constant 16 : index
    %c0_2 = arith.constant 0 : index
    %8 = vector.load %arg8[%c16, %c0_2] : memref<32x256xbf16, #tpu.memory_space<vmem>>, vector<16x256xbf16>
    %cst = arith.constant dense<0.000000e+00> : vector<128x256xf32>
    %9 = tpu.matmul %6, %7, %cst {dimension_numbers = #tpu.dot_dimension_numbers<[0], [0], [1], [1], [0, 1, 1, 1], [], []>} : vector<8x128xbf16>, vector<8x256xbf16>, vector<128x256xf32> -> vector<128x256xf32>
    %cst_3 = arith.constant dense<0xFF800000> : vector<128xf32>
    %10 = vector.multi_reduction <maximumf>, %9, %cst_3 [1] : vector<128x256xf32> to vector<128xf32>
    %11 = vector.shape_cast %10 : vector<128xf32> to vector<128x1xf32>
    %12 = vector.broadcast %11 : vector<128x1xf32> to vector<128x256xf32>
    %13 = arith.subf %9, %12 : vector<128x256xf32>
    %14 = math.exp %13 : vector<128x256xf32>
    %cst_4 = arith.constant dense<0.000000e+00> : vector<128xf32>
    %15 = vector.multi_reduction <add>, %14, %cst_4 [1] : vector<128x256xf32> to vector<128xf32>
    %16 = vector.shape_cast %15 : vector<128xf32> to vector<128x1xf32>
    %17 = tpu.reciprocal %16 {approx = true} : vector<128x1xf32> -> vector<128x1xf32>
    %18 = vector.broadcast %17 : vector<128x1xf32> to vector<128x256xf32>
    %19 = arith.mulf %14, %18 : vector<128x256xf32>
    %20 = arith.truncf %19 : vector<128x256xf32> to vector<128x256xbf16>
    %cst_5 = arith.constant dense<0.000000e+00> : vector<16x128xf32>
    %21 = tpu.matmul %8, %20, %cst_5 {dimension_numbers = #tpu.dot_dimension_numbers<[1], [1], [0], [0], [0, 0, 1, 0], [], []>} : vector<16x256xbf16>, vector<128x256xbf16>, vector<16x128xf32> -> vector<16x128xf32>
    %c0_6 = arith.constant 0 : index
    %c0_7 = arith.constant 0 : index
    %22 = memref.load %arg2[%c0_6, %c0_7] : memref<1x1xf32, #tpu.memory_space<smem>>
    %23 = vector.broadcast %22 : f32 to vector<16x128xf32>
    %24 = arith.mulf %23, %21 : vector<16x128xf32>
    %c0_8 = arith.constant 0 : index
    %c0_9 = arith.constant 0 : index
    %25 = arith.index_cast %4 : i32 to index
    %26 = vector.load %arg3[%c0_8, %c0_9, %25] : memref<1x16x256xf32, #tpu.memory_space<vmem>>, vector<1x16x128xf32>
    %27 = vector.shape_cast %26 : vector<1x16x128xf32> to vector<16x128xf32>
    %28 = arith.addf %24, %27 : vector<16x128xf32>
    %c0_10 = arith.constant 0 : index
    %c0_11 = arith.constant 0 : index
    %c0_12 = arith.constant 0 : index
    %29 = vector.load %arg6[%c0_10, %c0_11, %c0_12] : memref<1x16x128xf32, #tpu.memory_space<vmem>>, vector<1x16x128xf32>
    %30 = vector.shape_cast %29 : vector<1x16x128xf32> to vector<16x128xf32>
    %31 = vector.shape_cast %28 : vector<16x128xf32> to vector<1x16x128xf32>
    tpu.vector_store %arg6[%c0_10, %c0_11, %c0_12], %31 {strides = array<i32>} : memref<1x16x128xf32, #tpu.memory_space<vmem>>, vector<1x16x128xf32>,
    %c0_13 = arith.constant 0 : index
    %c0_14 = arith.constant 0 : index
    %c0_15 = arith.constant 0 : index
    %32 = vector.load %arg7[%c0_13, %c0_14, %c0_15] : memref<1x128x256xf32, #tpu.memory_space<vmem>>, vector<1x128x256xf32>
    %33 = vector.shape_cast %32 : vector<1x128x256xf32> to vector<128x256xf32>
    %34 = vector.shape_cast %19 : vector<128x256xf32> to vector<1x128x256xf32>
    tpu.vector_store %arg7[%c0_13, %c0_14, %c0_15], %34 {strides = array<i32>} : memref<1x128x256xf32, #tpu.memory_space<vmem>>, vector<1x128x256xf32>,
    return
  }
  func.func @transform_0(%arg0: i32, %arg1: i32) -> (i32, i32) {
    %c0_i32 = arith.constant 0 : i32
    %c0_i32_0 = arith.constant 0 : i32
    %c0_i32_1 = arith.constant 0 : i32
    return %c0_i32, %c0_i32_0 : i32, i32
  }
  func.func @transform_1(%arg0: i32, %arg1: i32) -> (i32, i32, i32) {
    %c0_i32 = arith.constant 0 : i32
    %c0_i32_0 = arith.constant 0 : i32
    %c0_i32_1 = arith.constant 0 : i32
    return %arg0, %c0_i32, %c0_i32_0 : i32, i32, i32
  }
  func.func @transform_2(%arg0: i32, %arg1: i32) -> (i32, i32) {
    %c0_i32 = arith.constant 0 : i32
    %c0_i32_0 = arith.constant 0 : i32
    %c0_i32_1 = arith.constant 0 : i32
    return %c0_i32, %c0_i32_0 : i32, i32
  }
  func.func @transform_3(%arg0: i32, %arg1: i32) -> (i32, i32) {
    %c0_i32 = arith.constant 0 : i32
    %c0_i32_0 = arith.constant 0 : i32
    %c0_i32_1 = arith.constant 0 : i32
    return %c0_i32, %c0_i32_0 : i32, i32
  }
  func.func @transform_4(%arg0: i32, %arg1: i32) -> (i32, i32, i32) {
    %c0_i32 = arith.constant 0 : i32
    %c0_i32_0 = arith.constant 0 : i32
    return %arg0, %c0_i32, %arg1 : i32, i32, i32
  }
  func.func @transform_5(%arg0: i32, %arg1: i32) -> (i32, i32, i32) {
    %c0_i32 = arith.constant 0 : i32
    %c0_i32_0 = arith.constant 0 : i32
    return %arg0, %arg1, %c0_i32 : i32, i32, i32
  }
}

</mosaic_0001>

<llo_original>
// kernel: tpu_custom_call.1
$region0: #{tpu_custom_call.1}
  #allocation0 [shape = 'u32[]', space=smem, size = 0x4, offset = 0x4, fixed_abs, tag = 'smem constant byte address 0x4 - core index']
  #allocation1 [shape = 'u32[144,128]{1,0:T(1,128)}', space=vmem, size = 0x12000, scoped, tag = 'internal scratch']
  #allocation2 [shape = 'bf16[32,256]{1,0:T(8,128)(2,1)}', space=vmem, size = 0x4000, scoped, tag = 'scratch operand']
  #allocation3 [shape = 'f32[1,1]{1,0:T(1,128)S(6)}', space=smem, size = 0x200, scoped, tag = 'scoped memory for tpu_custom_call.1']
  %s0 = inlined_call_operand.<no memory space> [shape: f32[1,1], index: 0, kind: input, shape index: {}]
  %s1 = inlined_call_operand.hbm [shape: f32[2,16,256], index: 1, kind: input, shape index: {}]
  %s2 = inlined_call_operand.vmem [shape: bf16[32,16], index: 2, kind: input, shape index: {}]
  %s3 = inlined_call_operand.vmem [shape: f32[32,1], index: 3, kind: input, shape index: {}]
  %s4 = inlined_call_operand.hbm [shape: f32[2,16,256], index: 4, kind: output, shape index: {0}]
  %s5 = inlined_call_operand.hbm [shape: f32[2,256,256], index: 5, kind: output, shape index: {1}]
  %6 = xla_tuple %s4, %s5
  %s7 = sld [smem:[#allocation0]]
  $region65: #{tpu_custom_call.1} parent=0
    _
  %s9 = ssub.s32 1, %s7
  %s10 = scalar_select 0, %s9, %s7
  %11 = sst [smem:[#allocation3]] %s0
  $region1: #{tpu_custom_call.1} parent=0
    #allocation4 [shape = 'u8[32768]{0}', space=vmem, size = 0x8000, scoped, tag = 'input window, operand 1']
    #allocation5 [shape = 's32[2]{0}', space=sflag, size = 0x8, scoped, tag = 'scoped memory for tpu_custom_call.1']
    #allocation6 [shape = 's32[2]{0}', space=sflag, size = 0x8, scoped, tag = 'scoped memory for tpu_custom_call.1']
    #allocation7 [shape = 'u8[16384]{0}', space=vmem, size = 0x4000, scoped, tag = 'output window, operand 0']
    #allocation8 [shape = 'u8[262144]{0}', space=vmem, size = 0x40000, scoped, tag = 'output window, operand 1']
    #allocation9 [shape = 's32[2]{0}', space=sflag, size = 0x8, scoped, tag = 'scoped memory for tpu_custom_call.1']
    %12 = vsyncpa [#allocation5], 0
    %s13 = scalar_lea.sflag [#allocation5], 1
    %14 = vsyncpa %s13, 0
    %15 = vsyncpa [#allocation6], 0
    %s16 = scalar_lea.sflag [#allocation6], 1
    %17 = vsyncpa %s16, 0
    %18 = vsyncpa [#allocation9], 0
    %s19 = scalar_lea.sflag [#allocation9], 1
    %20 = vsyncpa %s19, 0
    loop: start=0, step=1, limit=6
    $region2: #{tpu_custom_call.1} parent=1 // loop_pre_header
      _
    $region3: #{tpu_custom_call.1} parent=1 // loop_header
      %s22 = sphi 0, %s26
      %p23 = scmp.ge.s32.totalorder %s22, 6
      %s29 = sphi 0, %s41
      %s30 = sphi 0, %s37
      %s31 = sphi 0, %s29
      %s32 = sphi 0, %s30
      %s33 = sphi 0, %s31
      %s34 = sphi 0, %s32
      %s42 = sphi 0, %s42
      %s44 = sphi 0, %s42
      %s45 = sphi 0, %s44
      %s59 = sphi 0, %s45
      %s65 = sphi 0, %s67
      %s68 = sphi 0, %s65
      %s69 = sphi 0, %s68
      %s85 = sphi 0, %s69
      %s89 = sphi 0, %s89
      %s91 = sphi 0, %s89
      %s92 = sphi 0, %s91
      %s106 = sphi 0, %s92
      %s110 = sphi 0, %s110
      %s112 = sphi 0, %s110
      %s113 = sphi 0, %s112
      %s127 = sphi 0, %s113
      %s135 = sphi 0, %s137
      %s138 = sphi 0, %s135
      %s139 = sphi 0, %s138
      %s155 = sphi 0, %s139
      %s163 = sphi 0, %s165
      %s166 = sphi 0, %s163
      %s167 = sphi 0, %s166
      %s183 = sphi 0, %s167
    $region4: #{tpu_custom_call.1} parent=1 // loop_header_branch
      %25 = sbr.rel (%p23) target = $region8
    $region5: #{tpu_custom_call.1} parent=1 // loop_body
      %s27 = ssub.s32 %s22, 1
      %s28 = ssub.s32 %s22, 2
      %s35 = sadd.s32 1, %s30
      %p36 = scmp.ge.s32.totalorder %s35, 2
      %s37 = scalar_select %p36, 0, %s35
      %s38 = sadd.s32 1, %s29
      %s39 = scalar_select %p36, %s38, %s29
      %p40 = scmp.ge.s32.totalorder %s39, 2
      %s41 = scalar_select %p40, 0, %s39
      %s43 = sadd.s32 %s42, 1
      %p46 = scmp.eq.s32.totalorder %s22, 3
      %p47 = scmp.ne.s32.totalorder %s42, %s44
      %p48 = scmp.eq.s32.totalorder %s22, 0
      %p49 = por %p47, %p48
      %p50 = scmp.ne.s32.totalorder %s42, %s44
      %p51 = scmp.eq.s32.totalorder %s27, 3
      %p52 = por %p50, %p51
      %p53 = scmp.ne.s32.totalorder %s44, %s45
      %p54 = scmp.eq.s32.totalorder %s27, 0
      %p55 = por %p53, %p54
      %p56 = scmp.ne.s32.totalorder %s44, %s45
      %p57 = scmp.eq.s32.totalorder %s28, 3
      %p58 = por %p56, %p57
      %p60 = scmp.ne.s32.totalorder %s45, %s59
      %p61 = scmp.eq.s32.totalorder %s28, 0
      %p62 = por %p60, %p61
      %s63 = ssub.s32 %s29, %s41
      %p64 = scmp.eq.s32.totalorder %s63, 0
      %s66 = sadd.s32 %s65, 1
      %s67 = scalar_select %p64, %s65, %s66
      %p70 = pneg %p64
      %p71 = scmp.eq.s32.totalorder %s22, 3
      %p72 = por %p70, %p71
      %p73 = scmp.ne.s32.totalorder %s65, %s68
      %p74 = scmp.eq.s32.totalorder %s22, 0
      %p75 = por %p73, %p74
      %p76 = scmp.ne.s32.totalorder %s65, %s68
      %p77 = scmp.eq.s32.totalorder %s27, 3
      %p78 = por %p76, %p77
      %p79 = scmp.ne.s32.totalorder %s68, %s69
      %p80 = scmp.eq.s32.totalorder %s27, 0
      %p81 = por %p79, %p80
      %p82 = scmp.ne.s32.totalorder %s68, %s69
      %p83 = scmp.eq.s32.totalorder %s28, 3
      %p84 = por %p82, %p83
      %p86 = scmp.ne.s32.totalorder %s69, %s85
      %p87 = scmp.eq.s32.totalorder %s28, 0
      %p88 = por %p86, %p87
      %s90 = sadd.s32 %s89, 1
      %p93 = scmp.eq.s32.totalorder %s22, 3
      %p94 = scmp.ne.s32.totalorder %s89, %s91
      %p95 = scmp.eq.s32.totalorder %s22, 0
      %p96 = por %p94, %p95
      %p97 = scmp.ne.s32.totalorder %s89, %s91
      %p98 = scmp.eq.s32.totalorder %s27, 3
      %p99 = por %p97, %p98
      %p100 = scmp.ne.s32.totalorder %s91, %s92
      %p101 = scmp.eq.s32.totalorder %s27, 0
      %p102 = por %p100, %p101
      %p103 = scmp.ne.s32.totalorder %s91, %s92
      %p104 = scmp.eq.s32.totalorder %s28, 3
      %p105 = por %p103, %p104
      %p107 = scmp.ne.s32.totalorder %s92, %s106
      %p108 = scmp.eq.s32.totalorder %s28, 0
      %p109 = por %p107, %p108
      %s111 = sadd.s32 %s110, 1
      %p114 = scmp.eq.s32.totalorder %s22, 3
      %p115 = scmp.ne.s32.totalorder %s110, %s112
      %p116 = scmp.eq.s32.totalorder %s22, 0
      %p117 = por %p115, %p116
      %p118 = scmp.ne.s32.totalorder %s110, %s112
      %p119 = scmp.eq.s32.totalorder %s27, 3
      %p120 = por %p118, %p119
      %p121 = scmp.ne.s32.totalorder %s112, %s113
      %p122 = scmp.eq.s32.totalorder %s27, 0
      %p123 = por %p121, %p122
      %p124 = scmp.ne.s32.totalorder %s112, %s113
      %p125 = scmp.eq.s32.totalorder %s28, 3
      %p126 = por %p124, %p125
      %p128 = scmp.ne.s32.totalorder %s113, %s127
      %p129 = scmp.eq.s32.totalorder %s28, 0
      %p130 = por %p128, %p129
      %s131 = ssub.s32 %s29, %s41
      %s132 = ssub.s32 %s30, %s37
      %s133 = sor.u32 %s131, %s132
      %p134 = scmp.eq.s32.totalorder %s133, 0
      %s136 = sadd.s32 %s135, 1
      %s137 = scalar_select %p134, %s135, %s136
      %p140 = pneg %p134
      %p141 = scmp.eq.s32.totalorder %s22, 3
      %p142 = por %p140, %p141
      %p143 = scmp.ne.s32.totalorder %s135, %s138
      %p144 = scmp.eq.s32.totalorder %s22, 0
      %p145 = por %p143, %p144
      %p146 = scmp.ne.s32.totalorder %s135, %s138
      %p147 = scmp.eq.s32.totalorder %s27, 3
      %p148 = por %p146, %p147
      %p149 = scmp.ne.s32.totalorder %s138, %s139
      %p150 = scmp.eq.s32.totalorder %s27, 0
      %p151 = por %p149, %p150
      %p152 = scmp.ne.s32.totalorder %s138, %s139
      %p153 = scmp.eq.s32.totalorder %s28, 3
      %p154 = por %p152, %p153
      %p156 = scmp.ne.s32.totalorder %s139, %s155
      %p157 = scmp.eq.s32.totalorder %s28, 0
      %p158 = por %p156, %p157
      %s159 = ssub.s32 %s29, %s41
      %s160 = ssub.s32 %s30, %s37
      %s161 = sor.u32 %s159, %s160
      %p162 = scmp.eq.s32.totalorder %s161, 0
      %s164 = sadd.s32 %s163, 1
      %s165 = scalar_select %p162, %s163, %s164
      %p168 = pneg %p162
      %p169 = scmp.eq.s32.totalorder %s22, 3
      %p170 = por %p168, %p169
      %p171 = scmp.ne.s32.totalorder %s163, %s166
      %p172 = scmp.eq.s32.totalorder %s22, 0
      %p173 = por %p171, %p172
      %p174 = scmp.ne.s32.totalorder %s163, %s166
      %p175 = scmp.eq.s32.totalorder %s27, 3
      %p176 = por %p174, %p175
      %p177 = scmp.ne.s32.totalorder %s166, %s167
      %p178 = scmp.eq.s32.totalorder %s27, 0
      %p179 = por %p177, %p178
      %p180 = scmp.ne.s32.totalorder %s166, %s167
      %p181 = scmp.eq.s32.totalorder %s28, 3
      %p182 = por %p180, %p181
      %p184 = scmp.ne.s32.totalorder %s167, %s183
      %p185 = scmp.eq.s32.totalorder %s28, 0
      %p186 = por %p184, %p185
      %p187 = scmp.le.s32.totalorder 1, %s22
      %p188 = scmp.lt.s32.totalorder %s22, 5
      %p189 = pnand %p187, %p188
      %p190 = pneg %p189
      // Predicated region
      $region9: #{tpu_custom_call.1} parent=5 // pred_check
        _
      $region10: #{tpu_custom_call.1} parent=5 // pred_check_branch
        %192 = sbr.rel (%p189) target = $region12
      $region11: #{tpu_custom_call.1} parent=5 // pred_region
        %s193 = ssub.s32 %s22, 1
        // Predicated region
        $region13: #{tpu_custom_call.1} parent=11 // pred_check
          %p194 = pneg %p55
        $region14: #{tpu_custom_call.1} parent=11 // pred_check_branch
          %196 = sbr.rel (%p194) target = $region16
        $region15: #{tpu_custom_call.1} parent=11 // pred_region
          _
        $region16: #{tpu_custom_call.1} parent=11 // pred_fallthru
          _
        // Predicated region
        $region17: #{tpu_custom_call.1} parent=11 // pred_check
          %p197 = pneg %p102
        $region18: #{tpu_custom_call.1} parent=11 // pred_check_branch
          %199 = sbr.rel (%p197) target = $region20
        $region19: #{tpu_custom_call.1} parent=11 // pred_region
          _
        $region20: #{tpu_custom_call.1} parent=11 // pred_fallthru
          _
        // Predicated region
        $region21: #{tpu_custom_call.1} parent=11 // pred_check
          %p200 = pneg %p123
        $region22: #{tpu_custom_call.1} parent=11 // pred_check_branch
          %202 = sbr.rel (%p200) target = $region24
        $region23: #{tpu_custom_call.1} parent=11 // pred_region
          _
        $region24: #{tpu_custom_call.1} parent=11 // pred_fallthru
          _
      $region12: #{tpu_custom_call.1} parent=5 // pred_fallthru
        _
      %p203 = scmp.lt.s32.totalorder %s22, 4
      // Predicated region
      $region25: #{tpu_custom_call.1} parent=5 // pred_check
        %p204 = pneg %p203
      $region26: #{tpu_custom_call.1} parent=5 // pred_check_branch
        %206 = sbr.rel (%p204) target = $region28
      $region27: #{tpu_custom_call.1} parent=5 // pred_region
        // Predicated region
        $region29: #{tpu_custom_call.1} parent=27 // pred_check
          %p207 = pneg %p75
        $region30: #{tpu_custom_call.1} parent=27 // pred_check_branch
          %209 = sbr.rel (%p207) target = $region32
        $region31: #{tpu_custom_call.1} parent=27 // pred_region
          %s210 = sand.u32 %s65, 1
          %s211 = scalar_lea.sflag [#allocation5], %s210
          %s212 = sand.u32 %s65, 1
          %s213 = smul.addr %s212, 32
          %s214 = scalar_lea.vmem [#allocation4], %s213
          %s216 = ssub.s32 512, 512
          %217 = vsyncadd %s211, %s216
          %s218 = smul.addr %s29, 4
          %s219 = smul.addr %s218, 128
          %s220 = scalar_lea.hbm %s1, %s219
          %s221 = sshll.u32 %s214, 4
          %s222 = int_to_ptr.vmem [resolvable:$true] %s221
          %227 = dma.hbm_to_vmem [thread:$0]  %s220, 512, %s222, %s211, 256, 256, 16
        $region32: #{tpu_custom_call.1} parent=27 // pred_fallthru
          _
      $region28: #{tpu_custom_call.1} parent=5 // pred_fallthru
        _
      %p228 = scmp.le.s32.totalorder 1, %s22
      %p229 = scmp.lt.s32.totalorder %s22, 5
      %p230 = pnand %p228, %p229
      %p231 = pneg %p230
      // Predicated region
      $region33: #{tpu_custom_call.1} parent=5 // pred_check
        _
      $region34: #{tpu_custom_call.1} parent=5 // pred_check_branch
        %233 = sbr.rel (%p230) target = $region36
      $region35: #{tpu_custom_call.1} parent=5 // pred_region
        %s234 = ssub.s32 %s22, 1
        %s235 = sand.u32 %s68, 1
        %s236 = scalar_lea.sflag [#allocation5], %s235
        %s237 = sand.u32 %s68, 1
        %s238 = smul.addr %s237, 32
        %s239 = scalar_lea.vmem [#allocation4], %s238
        // Predicated region
        $region37: #{tpu_custom_call.1} parent=35 // pred_check
          %p240 = pneg %p81
        $region38: #{tpu_custom_call.1} parent=35 // pred_check_branch
          %242 = sbr.rel (%p240) target = $region40
        $region39: #{tpu_custom_call.1} parent=35 // pred_region
          %243 = dma.done %s236, 512
        $region40: #{tpu_custom_call.1} parent=35 // pred_fallthru
          _
        %p244 = pneg %p55
        %p245 = pneg %p52
        %s246 = sand.u32 %s68, 1
        %s247 = scalar_lea.sflag [#allocation5], %s246
        %s248 = sand.u32 %s68, 1
        %s249 = smul.addr %s248, 32
        %s250 = scalar_lea.vmem [#allocation4], %s249
        %p251 = pneg %p81
        %p252 = pneg %p78
        %p253 = pneg %p102
        %p254 = pneg %p99
        %p255 = pneg %p123
        %p256 = pneg %p120
        %p257 = pneg %p151
        %p258 = pneg %p148
        %s259 = sand.u32 %s138, 1
        %s260 = scalar_lea.sflag [#allocation6], %s259
        %s261 = sand.u32 %s138, 1
        %s262 = smul.addr %s261, 16
        %s263 = scalar_lea.vmem [#allocation7], %s262
        %p264 = pneg %p179
        %p265 = pneg %p176
        %s266 = sand.u32 %s166, 1
        %s267 = scalar_lea.sflag [#allocation9], %s266
        %s268 = sand.u32 %s166, 1
        %s269 = smul.addr %s268, 256
        %s270 = scalar_lea.vmem [#allocation8], %s269
        %s271 = smul.u32 16, %s32
        %p273 = scmp.eq.s32.totalorder %s32, 0
        // Predicated region
        $region41: #{tpu_custom_call.1} parent=35 // pred_check
          %p274 = pneg %p273
        $region42: #{tpu_custom_call.1} parent=35 // pred_check_branch
          %276 = sbr.rel (%p274) target = $region44
        $region43: #{tpu_custom_call.1} parent=35 // pred_region
          %v277 = vld [vmem:[%s239] sm:$0xff]
          %v278 = vld [vmem:[%s239 + $0x8] sm:$0xff]
          %v279 = vld [vmem:[%s239 + $0x10] sm:$0xff]
          %v280 = vld [vmem:[%s239 + $0x18] sm:$0xff]
          %v281 = vpack.c.bf16 %v279, %v277
          %v282 = vpack.c.bf16 %v280, %v278
          %v283 = vld [vmem:[%s2] sm:$0xf]
          %v284 = vld [vmem:[%s2 + $0x4] sm:$0xf]
          %v285 = vld [vmem:[%s2 + $0x8] sm:$0xf]
          %v286 = vld [vmem:[%s2 + $0xc] sm:$0xf]
          %v287 = vld [vmem:[%s3] sm:$0xff]
          %v288 = vld [vmem:[%s3 + $0x8] sm:$0xff]
          %v289 = vld [vmem:[%s3 + $0x10] sm:$0xff]
          %v290 = vld [vmem:[%s3 + $0x18] sm:$0xff]
          %292 = vset.pattern.permute.xlu0 0
          %293 = vperm.xlu0 %292, %v287
          %v294 = vpop.permute.xlu0 %293
          %297 = vset.pattern.permute.xlu0 0
          %298 = vperm.xlu0 %297, %v288
          %v299 = vpop.permute.xlu0 %298
          %302 = vset.pattern.permute.xlu0 0
          %303 = vperm.xlu0 %302, %v289
          %v304 = vpop.permute.xlu0 %303
          %307 = vset.pattern.permute.xlu0 0
          %308 = vperm.xlu0 %307, %v290
          %v309 = vpop.permute.xlu0 %308
          %v315 = vunpack.c.l.b16 %v283
          %v316 = vunpack.c.l.b16 %v284
          %v317 = vunpack.c.l.b16 %v285
          %v318 = vunpack.c.l.b16 %v286
          %v319 = vpack.c.b16 %v316, %v315
          %v320 = vpack.c.b16 %v318, %v317
          %vm321 = vcmask 130048
          %v323 = vsel %vm321, %v319, 0
          %v326 = vsel %vm321, %v320, 0
          %328 = vmatprep.subr.bf16.mxu0 0
          %329 = vmatpush1.bf16.msra.mxu0 0
          %330 = vmatprep.subr.bf16.mxu0 0
          %331 = vmatpush1.bf16.msra.mxu0 0
          %332 = vmatprep.subr.bf16.mxu0 0
          %333 = vmatpush1.bf16.msra.mxu0 0
          %334 = vmatprep.subr.bf16.mxu0 0
          %335 = vmatpush1.bf16.msra.mxu0 0
          %336 = vmatprep.subr.bf16.mxu0 0
          %337 = vmatpush1.bf16.msra.mxu0 0
          %338 = vmatprep.subr.bf16.mxu0 0
          %339 = vmatpush1.bf16.msra.mxu0 0
          %340 = vmatprep.subr.bf16.mxu0 0
          %341 = vmatpush1.bf16.msra.mxu0 0
          %342 = vmatprep.subr.bf16.mxu0 %v282
          %343 = vmatpush1.bf16.msra.mxu0 %v281
          %344 = vmatprep.subr.bf16.mxu0 0
          %345 = vmatpush2.bf16.msra.mxu0 0
          %346 = vmatprep.subr.bf16.mxu0 0
          %347 = vmatpush2.bf16.msra.mxu0 0
          %348 = vmatprep.subr.bf16.mxu0 0
          %349 = vmatpush2.bf16.msra.mxu0 0
          %350 = vmatprep.subr.bf16.mxu0 0
          %351 = vmatpush2.bf16.msra.mxu0 0
          %352 = vmatprep.subr.bf16.mxu0 0
          %353 = vmatpush2.bf16.msra.mxu0 0
          %354 = vmatprep.subr.bf16.mxu0 0
          %355 = vmatpush2.bf16.msra.mxu0 0
          %356 = vmatprep.subr.bf16.mxu0 0
          %357 = vmatpush2.bf16.msra.mxu0 0
          %358 = vmatprep.subr.bf16.mxu0 0
          %359 = vmatpush2.bf16.msra.mxu0 0
          %360 = vmatprep.mubr.bf16.mxu0 0
          %361 = vmatmul.mubr.bf16.gmra.mxu0 %v323
          %v362 = vpop.f32.mrf.mxu0
          %v363 = vadd.f32 %v294, %v362
          %v364 = vpop.f32.mrf.mxu0
          %v365 = vadd.f32 %v294, %v364
          %v366 = vpop.f32.mrf.mxu0
          %v367 = vadd.f32 %v299, %v366
          %v368 = vpop.f32.mrf.mxu0
          %v369 = vadd.f32 %v299, %v368
          %370 = vmatprep.mubr.bf16.mxu0 0
          %371 = vmatmul.mubr.bf16.gmra.mxu0 %v326
          %v372 = vpop.f32.mrf.mxu0
          %v373 = vadd.f32 %v304, %v372
          %v374 = vpop.f32.mrf.mxu0
          %v375 = vadd.f32 %v304, %v374
          %v376 = vpop.f32.mrf.mxu0
          %v377 = vadd.f32 %v309, %v376
          %v378 = vpop.f32.mrf.mxu0
          %v379 = vadd.f32 %v309, %v378
          %380 = vdwg.mxu0
          %v381 = vpack.c.bf16 %v367, %v363
          %v382 = vpack.c.bf16 %v369, %v365
          %v383 = vpack.c.bf16 %v377, %v373
          %v384 = vpack.c.bf16 %v379, %v375
          %v389 = vunpack.c.l.b16 %v381
          %v390 = vunpack.c.l.b16 %v382
          %v391 = vunpack.c.h.b16 %v381
          %v392 = vunpack.c.h.b16 %v382
          %v393 = vunpack.c.l.b16 %v383
          %v394 = vunpack.c.l.b16 %v384
          %v395 = vunpack.c.h.b16 %v383
          %v396 = vunpack.c.h.b16 %v384
          %v397 = vpack.c.b16 %v390, %v389
          %v398 = vpack.c.b16 %v392, %v391
          %v399 = vpack.c.b16 %v394, %v393
          %v400 = vpack.c.b16 %v396, %v395
          %405 = vst [vmem:[#allocation2] sm:$0xff] %v397
          %406 = vst [vmem:[#allocation2 + $0x8] sm:$0xff] %v398
          %407 = vst [vmem:[#allocation2 + $0x10] sm:$0xff] %v399
          %408 = vst [vmem:[#allocation2 + $0x18] sm:$0xff] %v400
        $region44: #{tpu_custom_call.1} parent=35 // pred_fallthru
          _
        %s409 = smul.u32 %s32, 128
        %s410 = sshra.s32 %s409, 7
        %s411 = sand.u32 %s409, 127
        %s412 = smul.addr %s410, 4
        %s413 = scalar_lea.vmem [#allocation2], %s412
        %v414 = vld [vmem:[%s413] sm:$0xf]
        %v415 = vld [vmem:[#allocation2 + $0x8] sm:$0xff]
        %v416 = vld [vmem:[#allocation2 + $0x10] sm:$0xff]
        %v417 = vld [vmem:[#allocation2 + $0x18] sm:$0xff]
        %418 = vxpose.xlu0.c.b16.start [1/8] %v414, 128
        %419 = vxpose.xlu0.c.b16.cont [2/8] 0, 128
        %420 = vxpose.xlu0.c.b16.cont [3/8] 0, 128
        %421 = vxpose.xlu0.c.b16.cont [4/8] 0, 128
        %422 = vxpose.xlu0.c.b16.cont [5/8] 0, 128
        %423 = vxpose.xlu0.c.b16.cont [6/8] 0, 128
        %424 = vxpose.xlu0.c.b16.cont [7/8] 0, 128
        %425 = vxpose.xlu0.c.b16.end [8/8] 0, 128
        %v426 = vpop.trf.xlu0
        %v427 = vpop.trf.xlu0
        %v428 = vpop.trf.xlu0
        %v429 = vpop.trf.xlu0
        %v430 = vpop.trf.xlu0
        %v431 = vpop.trf.xlu0
        %v432 = vpop.trf.xlu0
        %v433 = vpop.trf.xlu0
        %v435 = vunpack.c.l.b16 %v415
        %v436 = vunpack.c.h.b16 %v415
        %v437 = vpack.c.b16 %v435, %v435
        %v438 = vpack.c.b16 %v436, %v436
        %vm439 = vcmask 64512
        %v441 = vsel %vm439, %v426, 0
        %v444 = vsel %vm439, %v427, 0
        %v447 = vsel %vm439, %v428, 0
        %v450 = vsel %vm439, %v429, 0
        %v453 = vsel %vm439, %v430, 0
        %v456 = vsel %vm439, %v431, 0
        %v459 = vsel %vm439, %v432, 0
        %v462 = vsel %vm439, %v433, 0
        %vm464 = vcmask 1043456
        %v466 = vsel %vm464, %v437, 0
        %v469 = vsel %vm464, %v438, 0
        %471 = vmatprep.subr.bf16.mxu0 0
        %472 = vmatpush1.bf16.msra.mxu0 0
        %473 = vmatprep.subr.bf16.mxu0 0
        %474 = vmatpush1.bf16.msra.mxu0 0
        %475 = vmatprep.subr.bf16.mxu0 0
        %476 = vmatpush1.bf16.msra.mxu0 0
        %477 = vmatprep.subr.bf16.mxu0 0
        %478 = vmatpush1.bf16.msra.mxu0 0
        %479 = vmatprep.subr.bf16.mxu0 0
        %480 = vmatpush1.bf16.msra.mxu0 0
        %481 = vmatprep.subr.bf16.mxu0 0
        %482 = vmatpush1.bf16.msra.mxu0 0
        %483 = vmatprep.subr.bf16.mxu0 0
        %484 = vmatpush1.bf16.msra.mxu0 0
        %485 = vmatprep.subr.bf16.mxu0 %v469
        %486 = vmatpush1.bf16.msra.mxu0 %v466
        %487 = vmatprep.subr.bf16.mxu0 0
        %488 = vmatpush2.bf16.msra.mxu0 0
        %489 = vmatprep.subr.bf16.mxu0 0
        %490 = vmatpush2.bf16.msra.mxu0 0
        %491 = vmatprep.subr.bf16.mxu0 0
        %492 = vmatpush2.bf16.msra.mxu0 0
        %493 = vmatprep.subr.bf16.mxu0 0
        %494 = vmatpush2.bf16.msra.mxu0 0
        %495 = vmatprep.subr.bf16.mxu0 0
        %496 = vmatpush2.bf16.msra.mxu0 0
        %497 = vmatprep.subr.bf16.mxu0 0
        %498 = vmatpush2.bf16.msra.mxu0 0
        %499 = vmatprep.subr.bf16.mxu0 0
        %500 = vmatpush2.bf16.msra.mxu0 0
        %501 = vmatprep.subr.bf16.mxu0 0
        %502 = vmatpush2.bf16.msra.mxu0 0
        %503 = vmatprep.mubr.bf16.mxu0 0
        %504 = vmatmul.mubr.bf16.gmra.mxu0 %v441
        %v505 = vpop.f32.mrf.mxu0
        %v506 = vadd.f32 0.0, %v505
        %v507 = vpop.f32.mrf.mxu0
        %v508 = vadd.f32 0.0, %v507
        %v509 = vpop.f32.mrf.mxu0
        %v510 = vadd.f32 0.0, %v509
        %v511 = vpop.f32.mrf.mxu0
        %v512 = vadd.f32 0.0, %v511
        %513 = vmatprep.mubr.bf16.mxu0 0
        %514 = vmatmul.mubr.bf16.gmra.mxu0 %v444
        %v515 = vpop.f32.mrf.mxu0
        %v516 = vadd.f32 0.0, %v515
        %v517 = vpop.f32.mrf.mxu0
        %v518 = vadd.f32 0.0, %v517
        %v519 = vpop.f32.mrf.mxu0
        %v520 = vadd.f32 0.0, %v519
        %v521 = vpop.f32.mrf.mxu0
        %v522 = vadd.f32 0.0, %v521
        %523 = vmatprep.mubr.bf16.mxu0 0
        %524 = vmatmul.mubr.bf16.gmra.mxu0 %v447
        %v525 = vpop.f32.mrf.mxu0
        %v526 = vadd.f32 0.0, %v525
        %v527 = vpop.f32.mrf.mxu0
        %v528 = vadd.f32 0.0, %v527
        %v529 = vpop.f32.mrf.mxu0
        %v530 = vadd.f32 0.0, %v529
        %v531 = vpop.f32.mrf.mxu0
        %v532 = vadd.f32 0.0, %v531
        %533 = vmatprep.mubr.bf16.mxu0 0
        %534 = vmatmul.mubr.bf16.gmra.mxu0 %v450
        %v535 = vpop.f32.mrf.mxu0
        %v536 = vadd.f32 0.0, %v535
        %v537 = vpop.f32.mrf.mxu0
        %v538 = vadd.f32 0.0, %v537
        %v539 = vpop.f32.mrf.mxu0
        %v540 = vadd.f32 0.0, %v539
        %v541 = vpop.f32.mrf.mxu0
        %v542 = vadd.f32 0.0, %v541
        %543 = vmatprep.mubr.bf16.mxu0 0
        %544 = vmatmul.mubr.bf16.gmra.mxu0 %v453
        %v545 = vpop.f32.mrf.mxu0
        %v546 = vadd.f32 0.0, %v545
        %v547 = vpop.f32.mrf.mxu0
        %v548 = vadd.f32 0.0, %v547
        %v549 = vpop.f32.mrf.mxu0
        %v550 = vadd.f32 0.0, %v549
        %v551 = vpop.f32.mrf.mxu0
        %v552 = vadd.f32 0.0, %v551
        %553 = vmatprep.mubr.bf16.mxu0 0
        %554 = vmatmul.mubr.bf16.gmra.mxu0 %v456
        %v555 = vpop.f32.mrf.mxu0
        %v556 = vadd.f32 0.0, %v555
        %v557 = vpop.f32.mrf.mxu0
        %v558 = vadd.f32 0.0, %v557
        %v559 = vpop.f32.mrf.mxu0
        %v560 = vadd.f32 0.0, %v559
        %v561 = vpop.f32.mrf.mxu0
        %v562 = vadd.f32 0.0, %v561
        %563 = vmatprep.mubr.bf16.mxu0 0
        %564 = vmatmul.mubr.bf16.gmra.mxu0 %v459
        %v565 = vpop.f32.mrf.mxu0
        %v566 = vadd.f32 0.0, %v565
        %v567 = vpop.f32.mrf.mxu0
        %v568 = vadd.f32 0.0, %v567
        %v569 = vpop.f32.mrf.mxu0
        %v570 = vadd.f32 0.0, %v569
        %v571 = vpop.f32.mrf.mxu0
        %v572 = vadd.f32 0.0, %v571
        %573 = vmatprep.mubr.bf16.mxu0 0
        %574 = vmatmul.mubr.bf16.gmra.mxu0 %v462
        %v575 = vpop.f32.mrf.mxu0
        %v576 = vadd.f32 0.0, %v575
        %v577 = vpop.f32.mrf.mxu0
        %v578 = vadd.f32 0.0, %v577
        %v579 = vpop.f32.mrf.mxu0
        %v580 = vadd.f32 0.0, %v579
        %v581 = vpop.f32.mrf.mxu0
        %v582 = vadd.f32 0.0, %v581
        %583 = vdwg.mxu0
        %v584 = vmax.f32 %v506, %v508
        %585 = vmax.xlane.f32.xlu0 %v584
        %v586 = vpop.xlane.xlu0 %585
        %v587 = vmax.f32 %v510, %v512
        %588 = vmax.xlane.f32.xlu0 %v587
        %v589 = vpop.xlane.xlu0 %588
        %v590 = vmax.f32 %v516, %v518
        %591 = vmax.xlane.f32.xlu0 %v590
        %v592 = vpop.xlane.xlu0 %591
        %v593 = vmax.f32 %v520, %v522
        %594 = vmax.xlane.f32.xlu0 %v593
        %v595 = vpop.xlane.xlu0 %594
        %v596 = vmax.f32 %v526, %v528
        %597 = vmax.xlane.f32.xlu0 %v596
        %v598 = vpop.xlane.xlu0 %597
        %v599 = vmax.f32 %v530, %v532
        %600 = vmax.xlane.f32.xlu0 %v599
        %v601 = vpop.xlane.xlu0 %600
        %v602 = vmax.f32 %v536, %v538
        %603 = vmax.xlane.f32.xlu0 %v602
        %v604 = vpop.xlane.xlu0 %603
        %v605 = vmax.f32 %v540, %v542
        %606 = vmax.xlane.f32.xlu0 %v605
        %v607 = vpop.xlane.xlu0 %606
        %v608 = vmax.f32 %v546, %v548
        %609 = vmax.xlane.f32.xlu0 %v608
        %v610 = vpop.xlane.xlu0 %609
        %v611 = vmax.f32 %v550, %v552
        %612 = vmax.xlane.f32.xlu0 %v611
        %v613 = vpop.xlane.xlu0 %612
        %v614 = vmax.f32 %v556, %v558
        %615 = vmax.xlane.f32.xlu0 %v614
        %v616 = vpop.xlane.xlu0 %615
        %v617 = vmax.f32 %v560, %v562
        %618 = vmax.xlane.f32.xlu0 %v617
        %v619 = vpop.xlane.xlu0 %618
        %v620 = vmax.f32 %v566, %v568
        %621 = vmax.xlane.f32.xlu0 %v620
        %v622 = vpop.xlane.xlu0 %621
        %v623 = vmax.f32 %v570, %v572
        %624 = vmax.xlane.f32.xlu0 %v623
        %v625 = vpop.xlane.xlu0 %624
        %v626 = vmax.f32 %v576, %v578
        %627 = vmax.xlane.f32.xlu0 %v626
        %v628 = vpop.xlane.xlu0 %627
        %v629 = vmax.f32 %v580, %v582
        %630 = vmax.xlane.f32.xlu0 %v629
        %v631 = vpop.xlane.xlu0 %630
        %v632 = vsub.f32 %v506, %v586
        %v633 = vsub.f32 %v508, %v586
        %v634 = vsub.f32 %v510, %v589
        %v635 = vsub.f32 %v512, %v589
        %v636 = vsub.f32 %v516, %v592
        %v637 = vsub.f32 %v518, %v592
        %v638 = vsub.f32 %v520, %v595
        %v639 = vsub.f32 %v522, %v595
        %v640 = vsub.f32 %v526, %v598
        %v641 = vsub.f32 %v528, %v598
        %v642 = vsub.f32 %v530, %v601
        %v643 = vsub.f32 %v532, %v601
        %v644 = vsub.f32 %v536, %v604
        %v645 = vsub.f32 %v538, %v604
        %v646 = vsub.f32 %v540, %v607
        %v647 = vsub.f32 %v542, %v607
        %v648 = vsub.f32 %v546, %v610
        %v649 = vsub.f32 %v548, %v610
        %v650 = vsub.f32 %v550, %v613
        %v651 = vsub.f32 %v552, %v613
        %v652 = vsub.f32 %v556, %v616
        %v653 = vsub.f32 %v558, %v616
        %v654 = vsub.f32 %v560, %v619
        %v655 = vsub.f32 %v562, %v619
        %v656 = vsub.f32 %v566, %v622
        %v657 = vsub.f32 %v568, %v622
        %v658 = vsub.f32 %v570, %v625
        %v659 = vsub.f32 %v572, %v625
        %v660 = vsub.f32 %v576, %v628
        %v661 = vsub.f32 %v578, %v628
        %v662 = vsub.f32 %v580, %v631
        %v663 = vsub.f32 %v582, %v631
        %v664 = vmul.f32 %v632, 1.442695
        %v665 = vpow.pop %v664
        %v666 = vmul.f32 %v633, 1.442695
        %v667 = vpow.pop %v666
        %v668 = vmul.f32 %v634, 1.442695
        %v669 = vpow.pop %v668
        %v670 = vmul.f32 %v635, 1.442695
        %v671 = vpow.pop %v670
        %v672 = vmul.f32 %v636, 1.442695
        %v673 = vpow.pop %v672
        %v674 = vmul.f32 %v637, 1.442695
        %v675 = vpow.pop %v674
        %v676 = vmul.f32 %v638, 1.442695
        %v677 = vpow.pop %v676
        %v678 = vmul.f32 %v639, 1.442695
        %v679 = vpow.pop %v678
        %v680 = vmul.f32 %v640, 1.442695
        %v681 = vpow.pop %v680
        %v682 = vmul.f32 %v641, 1.442695
        %v683 = vpow.pop %v682
        %v684 = vmul.f32 %v642, 1.442695
        %v685 = vpow.pop %v684
        %v686 = vmul.f32 %v643, 1.442695
        %v687 = vpow.pop %v686
        %v688 = vmul.f32 %v644, 1.442695
        %v689 = vpow.pop %v688
        %v690 = vmul.f32 %v645, 1.442695
        %v691 = vpow.pop %v690
        %v692 = vmul.f32 %v646, 1.442695
        %v693 = vpow.pop %v692
        %v694 = vmul.f32 %v647, 1.442695
        %v695 = vpow.pop %v694
        %v696 = vmul.f32 %v648, 1.442695
        %v697 = vpow.pop %v696
        %v698 = vmul.f32 %v649, 1.442695
        %v699 = vpow.pop %v698
        %v700 = vmul.f32 %v650, 1.442695
        %v701 = vpow.pop %v700
        %v702 = vmul.f32 %v651, 1.442695
        %v703 = vpow.pop %v702
        %v704 = vmul.f32 %v652, 1.442695
        %v705 = vpow.pop %v704
        %v706 = vmul.f32 %v653, 1.442695
        %v707 = vpow.pop %v706
        %v708 = vmul.f32 %v654, 1.442695
        %v709 = vpow.pop %v708
        %v710 = vmul.f32 %v655, 1.442695
        %v711 = vpow.pop %v710
        %v712 = vmul.f32 %v656, 1.442695
        %v713 = vpow.pop %v712
        %v714 = vmul.f32 %v657, 1.442695
        %v715 = vpow.pop %v714
        %v716 = vmul.f32 %v658, 1.442695
        %v717 = vpow.pop %v716
        %v718 = vmul.f32 %v659, 1.442695
        %v719 = vpow.pop %v718
        %v720 = vmul.f32 %v660, 1.442695
        %v721 = vpow.pop %v720
        %v722 = vmul.f32 %v661, 1.442695
        %v723 = vpow.pop %v722
        %v724 = vmul.f32 %v662, 1.442695
        %v725 = vpow.pop %v724
        %v726 = vmul.f32 %v663, 1.442695
        %v727 = vpow.pop %v726
        %v728 = vadd.f32 %v665, %v667
        %729 = vadd.xlane.f32.xlu0 %v728
        %v730 = vpop.xlane.xlu0 %729
        %v731 = vadd.f32 %v669, %v671
        %732 = vadd.xlane.f32.xlu0 %v731
        %v733 = vpop.xlane.xlu0 %732
        %v734 = vadd.f32 %v673, %v675
        %735 = vadd.xlane.f32.xlu0 %v734
        %v736 = vpop.xlane.xlu0 %735
        %v737 = vadd.f32 %v677, %v679
        %738 = vadd.xlane.f32.xlu0 %v737
        %v739 = vpop.xlane.xlu0 %738
        %v740 = vadd.f32 %v681, %v683
        %741 = vadd.xlane.f32.xlu0 %v740
        %v742 = vpop.xlane.xlu0 %741
        %v743 = vadd.f32 %v685, %v687
        %744 = vadd.xlane.f32.xlu0 %v743
        %v745 = vpop.xlane.xlu0 %744
        %v746 = vadd.f32 %v689, %v691
        %747 = vadd.xlane.f32.xlu0 %v746
        %v748 = vpop.xlane.xlu0 %747
        %v749 = vadd.f32 %v693, %v695
        %750 = vadd.xlane.f32.xlu0 %v749
        %v751 = vpop.xlane.xlu0 %750
        %v752 = vadd.f32 %v697, %v699
        %753 = vadd.xlane.f32.xlu0 %v752
        %v754 = vpop.xlane.xlu0 %753
        %v755 = vadd.f32 %v701, %v703
        %756 = vadd.xlane.f32.xlu0 %v755
        %v757 = vpop.xlane.xlu0 %756
        %v758 = vadd.f32 %v705, %v707
        %759 = vadd.xlane.f32.xlu0 %v758
        %v760 = vpop.xlane.xlu0 %759
        %v761 = vadd.f32 %v709, %v711
        %762 = vadd.xlane.f32.xlu0 %v761
        %v763 = vpop.xlane.xlu0 %762
        %v764 = vadd.f32 %v713, %v715
        %765 = vadd.xlane.f32.xlu0 %v764
        %v766 = vpop.xlane.xlu0 %765
        %v767 = vadd.f32 %v717, %v719
        %768 = vadd.xlane.f32.xlu0 %v767
        %v769 = vpop.xlane.xlu0 %768
        %v770 = vadd.f32 %v721, %v723
        %771 = vadd.xlane.f32.xlu0 %v770
        %v772 = vpop.xlane.xlu0 %771
        %v773 = vadd.f32 %v725, %v727
        %774 = vadd.xlane.f32.xlu0 %v773
        %v775 = vpop.xlane.xlu0 %774
        %v776 = vrcp.pop %v730
        %v777 = vrcp.pop %v733
        %v778 = vrcp.pop %v736
        %v779 = vrcp.pop %v739
        %v780 = vrcp.pop %v742
        %v781 = vrcp.pop %v745
        %v782 = vrcp.pop %v748
        %v783 = vrcp.pop %v751
        %v784 = vrcp.pop %v754
        %v785 = vrcp.pop %v757
        %v786 = vrcp.pop %v760
        %v787 = vrcp.pop %v763
        %v788 = vrcp.pop %v766
        %v789 = vrcp.pop %v769
        %v790 = vrcp.pop %v772
        %v791 = vrcp.pop %v775
        %v792 = vmul.f32 %v665, %v776
        %v793 = vmul.f32 %v667, %v776
        %v794 = vmul.f32 %v669, %v777
        %v795 = vmul.f32 %v671, %v777
        %v796 = vmul.f32 %v673, %v778
        %v797 = vmul.f32 %v675, %v778
        %v798 = vmul.f32 %v677, %v779
        %v799 = vmul.f32 %v679, %v779
        %v800 = vmul.f32 %v681, %v780
        %v801 = vmul.f32 %v683, %v780
        %v802 = vmul.f32 %v685, %v781
        %v803 = vmul.f32 %v687, %v781
        %v804 = vmul.f32 %v689, %v782
        %v805 = vmul.f32 %v691, %v782
        %v806 = vmul.f32 %v693, %v783
        %v807 = vmul.f32 %v695, %v783
        %v808 = vmul.f32 %v697, %v784
        %v809 = vmul.f32 %v699, %v784
        %v810 = vmul.f32 %v701, %v785
        %v811 = vmul.f32 %v703, %v785
        %v812 = vmul.f32 %v705, %v786
        %v813 = vmul.f32 %v707, %v786
        %v814 = vmul.f32 %v709, %v787
        %v815 = vmul.f32 %v711, %v787
        %v816 = vmul.f32 %v713, %v788
        %v817 = vmul.f32 %v715, %v788
        %v818 = vmul.f32 %v717, %v789
        %v819 = vmul.f32 %v719, %v789
        %v820 = vmul.f32 %v721, %v790
        %v821 = vmul.f32 %v723, %v790
        %v822 = vmul.f32 %v725, %v791
        %v823 = vmul.f32 %v727, %v791
        %v824 = vpack.c.bf16 %v794, %v792
        %v825 = vpack.c.bf16 %v795, %v793
        %v826 = vpack.c.bf16 %v798, %v796
        %v827 = vpack.c.bf16 %v799, %v797
        %v828 = vpack.c.bf16 %v802, %v800
        %v829 = vpack.c.bf16 %v803, %v801
        %v830 = vpack.c.bf16 %v806, %v804
        %v831 = vpack.c.bf16 %v807, %v805
        %v832 = vpack.c.bf16 %v810, %v808
        %v833 = vpack.c.bf16 %v811, %v809
        %v834 = vpack.c.bf16 %v814, %v812
        %v835 = vpack.c.bf16 %v815, %v813
        %v836 = vpack.c.bf16 %v818, %v816
        %v837 = vpack.c.bf16 %v819, %v817
        %v838 = vpack.c.bf16 %v822, %v820
        %v839 = vpack.c.bf16 %v823, %v821
        %v842 = vunpack.c.l.b16 %v416
        %v843 = vunpack.c.h.b16 %v416
        %v844 = vunpack.c.l.b16 %v417
        %v845 = vunpack.c.h.b16 %v417
        %v846 = vpack.c.b16 %v844, %v842
        %v847 = vpack.c.b16 %v845, %v843
        %850 = vmatprep.subr.bf16.mxu0 %v839
        %851 = vmatpush1.bf16.xpose.msra.mxu0 %v838
        %852 = vmatprep.subr.bf16.mxu0 %v837
        %853 = vmatpush1.bf16.xpose.msra.mxu0 %v836
        %854 = vmatprep.subr.bf16.mxu0 %v835
        %855 = vmatpush1.bf16.xpose.msra.mxu0 %v834
        %856 = vmatprep.subr.bf16.mxu0 %v833
        %857 = vmatpush1.bf16.xpose.msra.mxu0 %v832
        %858 = vmatprep.subr.bf16.mxu0 %v831
        %859 = vmatpush1.bf16.xpose.msra.mxu0 %v830
        %860 = vmatprep.subr.bf16.mxu0 %v829
        %861 = vmatpush1.bf16.xpose.msra.mxu0 %v828
        %862 = vmatprep.subr.bf16.mxu0 %v827
        %863 = vmatpush1.bf16.xpose.msra.mxu0 %v826
        %864 = vmatprep.subr.bf16.mxu0 %v825
        %865 = vmatpush1.bf16.xpose.msra.mxu0 %v824
        %866 = vmatprep.subr.bf16.mxu0 0
        %867 = vmatpush2.bf16.xpose.msra.mxu0 0
        %868 = vmatprep.subr.bf16.mxu0 0
        %869 = vmatpush2.bf16.xpose.msra.mxu0 0
        %870 = vmatprep.subr.bf16.mxu0 0
        %871 = vmatpush2.bf16.xpose.msra.mxu0 0
        %872 = vmatprep.subr.bf16.mxu0 0
        %873 = vmatpush2.bf16.xpose.msra.mxu0 0
        %874 = vmatprep.subr.bf16.mxu0 0
        %875 = vmatpush2.bf16.xpose.msra.mxu0 0
        %876 = vmatprep.subr.bf16.mxu0 0
        %877 = vmatpush2.bf16.xpose.msra.mxu0 0
        %878 = vmatprep.subr.bf16.mxu0 0
        %879 = vmatpush2.bf16.xpose.msra.mxu0 0
        %880 = vmatprep.subr.bf16.mxu0 0
        %881 = vmatpush2.bf16.xpose.msra.mxu0 0
        %882 = vmatprep.mubr.bf16.mxu0 %v847
        %883 = vmatmul.mubr.bf16.gmra.mxu0 %v846
        %v884 = vpop.f32.mrf.mxu0
        %v885 = vadd.f32 0.0, %v884
        %v886 = vpop.f32.mrf.mxu0
        %v887 = vpop.f32.mrf.mxu0
        %v888 = vadd.f32 0.0, %v887
        %v889 = vpop.f32.mrf.mxu0
        %890 = vdwg.mxu0
        %s891 = sld [smem:[#allocation3]]
        %v892 = vstv %s891
        %v893 = vmul.f32 %v892, %v885
        %v894 = vmul.f32 %v892, %v888
        %s895 = smul.addr %s410, 8
        %s896 = scalar_lea.vmem %s239, %s895 [#allocation4]
        %v897 = vld [vmem:[%s896] sm:$0xff]
        %v898 = vld [vmem:[%s896 + $0x10] sm:$0xff]
        %v899 = vadd.f32 %v893, %v897
        %v900 = vadd.f32 %v894, %v898
        %901 = vst [vmem:[%s263] sm:$0xff] %v899
        %902 = vst [vmem:[%s263 + $0x8] sm:$0xff] %v900
        %903 = vst [vmem:[%s270] sm:$0xff] %v792
        %904 = vst [vmem:[%s270 + $0x8] sm:$0xff] %v793
        %905 = vst [vmem:[%s270 + $0x10] sm:$0xff] %v794
        %906 = vst [vmem:[%s270 + $0x18] sm:$0xff] %v795
        %907 = vst [vmem:[%s270 + $0x20] sm:$0xff] %v796
        %908 = vst [vmem:[%s270 + $0x28] sm:$0xff] %v797
        %909 = vst [vmem:[%s270 + $0x30] sm:$0xff] %v798
        %910 = vst [vmem:[%s270 + $0x38] sm:$0xff] %v799
        %911 = vst [vmem:[%s270 + $0x40] sm:$0xff] %v800
        %912 = vst [vmem:[%s270 + $0x48] sm:$0xff] %v801
        %913 = vst [vmem:[%s270 + $0x50] sm:$0xff] %v802
        %914 = vst [vmem:[%s270 + $0x58] sm:$0xff] %v803
        %915 = vst [vmem:[%s270 + $0x60] sm:$0xff] %v804
        %916 = vst [vmem:[%s270 + $0x68] sm:$0xff] %v805
        %917 = vst [vmem:[%s270 + $0x70] sm:$0xff] %v806
        %918 = vst [vmem:[%s270 + $0x78] sm:$0xff] %v807
        %919 = vst [vmem:[%s270 + $0x80] sm:$0xff] %v808
        %920 = vst [vmem:[%s270 + $0x88] sm:$0xff] %v809
        %921 = vst [vmem:[%s270 + $0x90] sm:$0xff] %v810
        %922 = vst [vmem:[%s270 + $0x98] sm:$0xff] %v811
        %923 = vst [vmem:[%s270 + $0xa0] sm:$0xff] %v812
        %924 = vst [vmem:[%s270 + $0xa8] sm:$0xff] %v813
        %925 = vst [vmem:[%s270 + $0xb0] sm:$0xff] %v814
        %926 = vst [vmem:[%s270 + $0xb8] sm:$0xff] %v815
        %927 = vst [vmem:[%s270 + $0xc0] sm:$0xff] %v816
        %928 = vst [vmem:[%s270 + $0xc8] sm:$0xff] %v817
        %929 = vst [vmem:[%s270 + $0xd0] sm:$0xff] %v818
        %930 = vst [vmem:[%s270 + $0xd8] sm:$0xff] %v819
        %931 = vst [vmem:[%s270 + $0xe0] sm:$0xff] %v820
        %932 = vst [vmem:[%s270 + $0xe8] sm:$0xff] %v821
        %933 = vst [vmem:[%s270 + $0xf0] sm:$0xff] %v822
        %934 = vst [vmem:[%s270 + $0xf8] sm:$0xff] %v823
        %s935 = sand.u32 %s138, 1
        %s936 = scalar_lea.sflag [#allocation6], %s935
        %s937 = sand.u32 %s138, 1
        %s938 = smul.addr %s937, 16
        %s939 = scalar_lea.vmem [#allocation7], %s938
        %s940 = sand.u32 %s166, 1
        %s941 = scalar_lea.sflag [#allocation9], %s940
        %s942 = sand.u32 %s166, 1
        %s943 = smul.addr %s942, 256
        %s944 = scalar_lea.vmem [#allocation8], %s943
        // Predicated region
        $region45: #{tpu_custom_call.1} parent=35 // pred_check
          %p945 = pneg %p148
        $region46: #{tpu_custom_call.1} parent=35 // pred_check_branch
          %947 = sbr.rel (%p945) target = $region48
        $region47: #{tpu_custom_call.1} parent=35 // pred_region
          %s949 = ssub.s32 256, 256
          %950 = vsyncadd %s936, %s949
          %s951 = smul.addr %s31, 4
          %s952 = sadd.s32 %s32, %s951
          %s953 = smul.addr %s952, 128
          %s954 = scalar_lea.hbm %s4, %s953
          %s955 = sshll.u32 %s939, 4
          %s956 = int_to_ptr.vmem [resolvable:$true] %s955
          %961 = dma.vmem_to_hbm [thread:$0]  %s956, 256, %s954, %s936, 128, 256, 8
        $region48: #{tpu_custom_call.1} parent=35 // pred_fallthru
          _
        // Predicated region
        $region49: #{tpu_custom_call.1} parent=35 // pred_check
          %p962 = pneg %p176
        $region50: #{tpu_custom_call.1} parent=35 // pred_check_branch
          %964 = sbr.rel (%p962) target = $region52
        $region51: #{tpu_custom_call.1} parent=35 // pred_region
          %s965 = smul.u32 16, %s32
          %s967 = ssub.s32 4096, 4096
          %968 = vsyncadd %s941, %s967
          %s969 = smul.addr %s965, 2
          %s970 = smul.addr %s31, 64
          %s971 = sadd.s32 %s969, %s970
          %s972 = smul.addr %s971, 128
          %s973 = scalar_lea.hbm %s5, %s972
          %s974 = sshll.u32 %s944, 4
          %s975 = int_to_ptr.vmem [resolvable:$true] %s974
          %980 = dma.vmem_to_hbm [thread:$0]  %s975, 4096, %s973, %s941, 256, 256, 16
        $region52: #{tpu_custom_call.1} parent=35 // pred_fallthru
          _
      $region36: #{tpu_custom_call.1} parent=5 // pred_fallthru
        _
      %p981 = scmp.le.s32.totalorder 2, %s22
      // Predicated region
      $region53: #{tpu_custom_call.1} parent=5 // pred_check
        %p982 = pneg %p981
      $region54: #{tpu_custom_call.1} parent=5 // pred_check_branch
        %984 = sbr.rel (%p982) target = $region56
      $region55: #{tpu_custom_call.1} parent=5 // pred_region
        %s985 = ssub.s32 %s22, 2
        // Predicated region
        $region57: #{tpu_custom_call.1} parent=55 // pred_check
          %p986 = pneg %p154
        $region58: #{tpu_custom_call.1} parent=55 // pred_check_branch
          %988 = sbr.rel (%p986) target = $region60
        $region59: #{tpu_custom_call.1} parent=55 // pred_region
          %s989 = sand.u32 %s139, 1
          %s990 = scalar_lea.sflag [#allocation6], %s989
          %s991 = sand.u32 %s139, 1
          %s992 = smul.addr %s991, 16
          %s993 = scalar_lea.vmem [#allocation7], %s992
          %994 = dma.done %s990, 256
        $region60: #{tpu_custom_call.1} parent=55 // pred_fallthru
          _
        // Predicated region
        $region61: #{tpu_custom_call.1} parent=55 // pred_check
          %p995 = pneg %p182
        $region62: #{tpu_custom_call.1} parent=55 // pred_check_branch
          %997 = sbr.rel (%p995) target = $region64
        $region63: #{tpu_custom_call.1} parent=55 // pred_region
          %s998 = sand.u32 %s167, 1
          %s999 = scalar_lea.sflag [#allocation9], %s998
          %s1000 = sand.u32 %s167, 1
          %s1001 = smul.addr %s1000, 256
          %s1002 = scalar_lea.vmem [#allocation8], %s1001
          %1003 = dma.done %s999, 4096
        $region64: #{tpu_custom_call.1} parent=55 // pred_fallthru
          _
      $region56: #{tpu_custom_call.1} parent=5 // pred_fallthru
        _
    $region6: #{tpu_custom_call.1} parent=1 // loop_footer
      %s26 = sadd.s32 1, %s22
    $region7: #{tpu_custom_call.1} parent=1 // loop_footer_branch
      %21 = sbr.rel target = $region3
    $region8: #{tpu_custom_call.1} parent=1 // loop_exit
      _
    %1004 = vsyncpa [#allocation5], 1
    %s1005 = scalar_lea.sflag [#allocation5], 1
    %1006 = vsyncpa %s1005, 1
    %1007 = vsyncpa [#allocation6], 1
    %s1008 = scalar_lea.sflag [#allocation6], 1
    %1009 = vsyncpa %s1008, 1
    %1010 = vsyncpa [#allocation9], 1
    %s1011 = scalar_lea.sflag [#allocation9], 1
    %1012 = vsyncpa %s1011, 1

</llo_original>
